<compile_context>
chip_gen: v7x
topology: tpu7x:2x2x1
jax: 0.10.0
libtpu: 0.0.40
codegen_flags: <defaults>
</compile_context>

<pallas_src>
import math

import jax
import jax.numpy as jnp
from jax.experimental import pallas as pl
from jax.experimental.pallas import tpu as pltpu


# ----------------------------------------------------------------------------
# Fused kernel: build M = D^-1/2 Ahat^T D^-1/2 once (on-chip), then run every
# GCNConv layer (X@W, M@(XW)+b, ELU, dropout) without leaving VMEM.
# ----------------------------------------------------------------------------
def _make_gcn_comm_kernel(num_layers, feat_dims, batch, n_agents, dropout_p, use_dropout):
    B, N = batch, n_agents

    def kernel(adj_t_ref, x_ref, *rest):
        # rest = (w_0, b_0, ..., w_{L-1}, b_{L-1}, [u_0 .. u_{L-2} if dropout], out_ref)
        wb_refs = rest[:2 * num_layers]
        u_refs = rest[2 * num_layers:2 * num_layers + (num_layers - 1)] if use_dropout else ()
        out_ref = rest[-1]

        one = jnp.float32(1.0)
        zero = jnp.float32(0.0)

        # --- symmetric-normalized propagation, built once, kept on-chip ------------------
        # adj_t[b, i, j] == adj[b, j, i] (edge j -> i). GCNConv(dense_to_sparse(adj)) means:
        #   Ahat = binarize(adj) with self-loops, d_i = in-degree,
        #   out[i] = sum_j d_i^-1/2 * Ahat[j, i] * d_j^-1/2 * (X W)[j] + bias
        at = adj_t_ref[...]                                             # (B, N, N)
        row = jax.lax.broadcasted_iota(jnp.int32, (B, N, N), 1)
        col = jax.lax.broadcasted_iota(jnp.int32, (B, N, N), 2)
        eye = row == col
        ahat_t = jnp.where(eye, one, jnp.where(at != 0, one, zero))     # Ahat^T  (B, N, N)
        deg = jnp.sum(ahat_t, axis=2, keepdims=True)                    # (B, N, 1) in-degree d_i
        dinv = jax.lax.rsqrt(deg)                                       # (B, N, 1) d^-1/2 (deg>=1)
        prop = dinv * ahat_t                                            # rows pre-scaled: d_i^-1/2 Ahat[j,i]

        # --- layers -----------------------------------------------------------------------
        h = x_ref[...]                                                  # (B, N, F0)
        for l in range(num_layers):
            fin, fout = feat_dims[l], feat_dims[l + 1]
            w = wb_refs[2 * l][...]                                     # (fin, fout)
            bias = wb_refs[2 * l + 1][...]                              # (1, fout)
            # batched X @ W across the whole batch (one MXU pass instead of B tiny ones)
            hw = jnp.dot(h.reshape(B * N, fin), w,
                         preferred_element_type=jnp.float32).reshape(B, N, fout)
            z = dinv * hw                                               # scale rows by d_j^-1/2
            out = jnp.einsum("bij,bjf->bif", prop, z,
                             preferred_element_type=jnp.float32)
            out = out + bias.reshape(1, 1, fout)
            if l + 1 < num_layers:
                # ELU(alpha=1); clamp exp arg so the unselected branch never produces inf.
                out = jnp.where(out > 0, out, jnp.exp(jnp.minimum(out, zero)) - one)
                if use_dropout:
                    # F.dropout(p, training): drop with prob p, scale kept by 1/(1-p).
                    keep = u_refs[l][...] >= jnp.float32(dropout_p)
                    out = jnp.where(keep, out * jnp.float32(1.0 / (1.0 - dropout_p)), zero)
            h = out

        out_ref[...] = h.astype(out_ref.dtype)

    return kernel


# ----------------------------------------------------------------------------
# GCNComm.forward
# ----------------------------------------------------------------------------
def gcn_comm_forward(x, adj, params, *, training=True, dropout_p=0.2, seed=0):
    """x: [B, n_agents, obs_shape], adj: [B, n_agents, n_agents] -> [B, n_agents, msg_out_size]."""
    B, N, F0 = x.shape
    num_layers = len(params)
    feat_dims = [F0] + [w.shape[1] for (w, _) in params]
    use_dropout = bool(training) and dropout_p > 0.0 and num_layers > 1

    # Layout plumbing outside the kernel: pass adj^T so the kernel needs only one lane
    # reduction for the degrees and only standard (non-transposed) matmuls.
    adj_t = jnp.swapaxes(adj.astype(jnp.float32), -1, -2)

    inputs = [adj_t, x.astype(jnp.float32)]
    in_specs = [pl.BlockSpec((B, N, N), lambda i: (0, 0, 0)),
                pl.BlockSpec((B, N, F0), lambda i: (0, 0, 0))]
    for (w, b) in params:
        inputs += [w, b]
        in_specs += [pl.BlockSpec(w.shape, lambda i: (0, 0)),
                     pl.BlockSpec(b.shape, lambda i: (0, 0))]
    if use_dropout:
        # TODO(synk): dropout RNG stream differs from torch's; vary `seed` per training step
        # or the same masks are reused every step.
        key = jax.random.PRNGKey(seed)
        for l in range(num_layers - 1):
            key, sub = jax.random.split(key)
            fl = feat_dims[l + 1]
            inputs.append(jax.random.uniform(sub, (B, N, fl), dtype=jnp.float32))
            in_specs.append(pl.BlockSpec((B, N, fl), lambda i: (0, 0, 0)))

    flops = sum(2 * B * N * feat_dims[l] * feat_dims[l + 1] + 2 * B * N * N * feat_dims[l + 1]
                for l in range(num_layers))
    transcendentals = B * N * (1 + sum(feat_dims[1:-1]))          # rsqrt + ELU exps
    bytes_accessed = 4 * (sum(math.prod(a.shape) for a in inputs) + B * N * feat_dims[-1])

    kernel = _make_gcn_comm_kernel(num_layers, tuple(feat_dims), B, N, dropout_p, use_dropout)
    return pl.pallas_call(
        kernel,
        out_shape=jax.ShapeDtypeStruct((B, N, feat_dims[-1]), jnp.float32),
        grid=(1,),  # single fused step: everything stays resident on-chip at these sizes.
        # TODO(synk): for large B switch to grid=(B,) with dimension_semantics=("parallel",)
        # (v7x megacore) and K-tile the NxN propagation matmul if N grows past VMEM limits.
        in_specs=in_specs,
        out_specs=pl.BlockSpec((B, N, feat_dims[-1]), lambda i: (0, 0, 0)),
        compiler_params=pltpu.CompilerParams(dimension_semantics=("arbitrary",)),
        cost_estimate=pl.CostEstimate(flops=flops, transcendentals=transcendentals,
                                      bytes_accessed=bytes_accessed),
    )(*inputs)


# ----------------------------------------------------------------------------
# Deterministic parameter init (GCNConv: glorot weight, zero bias)
# ----------------------------------------------------------------------------
def init_params(key, obs_shape, hidden, out_size, num_layers):
    in_dims = [obs_shape] + [hidden] * (num_layers - 1)
    out_dims = [hidden] * (num_layers - 1) + [out_size]
    params = []
    for fi, fo in zip(in_dims, out_dims):
        key, sub = jax.random.split(key)
        limit = (6.0 / (fi + fo)) ** 0.5
        w = jax.random.uniform(sub, (fi, fo), jnp.float32, -limit, limit)
        b = jnp.zeros((1, fo), jnp.float32)
        params.append((w, b))
    return params


# ----------------------------------------------------------------------------
# Pure-JAX reference (eval mode, no dropout) for correctness check
# ----------------------------------------------------------------------------
def gcn_comm_ref(x, adj, params):
    B, N, _ = adj.shape
    eye = jnp.eye(N, dtype=jnp.float32)
    abin = jnp.where(adj != 0, 1.0, 0.0)
    ahat = jnp.where(eye[None, :, :] > 0, 1.0, abin)               # (B, N, N), ahat[b, j, i]
    deg = jnp.sum(ahat, axis=1)                                    # in-degree d_i
    dinv = 1.0 / jnp.sqrt(deg)
    m = dinv[:, :, None] * jnp.swapaxes(ahat, 1, 2) * dinv[:, None, :]
    h = x
    for i, (w, b) in enumerate(params):
        h = jnp.einsum("bij,bjf->bif", m, h @ w) + b[None]
        if i + 1 < len(params):
            h = jnp.where(h > 0, h, jnp.exp(h) - 1.0)
    return h


if __name__ == "__main__":
    B, N, OBS, HID, OUT, LAYERS = 2, 8, 16, 32, 16, 3  # msg_hidden_dim=32, msg_out_size=16, num_layers=3
    key = jax.random.PRNGKey(0)
    kx, ka, kp = jax.random.split(key, 3)
    x = jax.random.normal(kx, (B, N, OBS), dtype=jnp.float32)
    adj = (jax.random.uniform(ka, (B, N, N)) < 0.4).astype(jnp.float32)
    params = init_params(kp, OBS, HID, OUT, LAYERS)

    # eval mode (dropout off) -> numerically checkable against pure-JAX reference
    out_eval = gcn_comm_forward(x, adj, params, training=False)
    jax.block_until_ready(out_eval)
    ref = gcn_comm_ref(x, adj, params)
    assert out_eval.shape == (B, N, OUT), out_eval.shape
    err = float(jnp.max(jnp.abs(out_eval - ref)))
    assert err < 1e-4, f"mismatch vs reference: {err}"

    # training mode (module default): ELU + dropout(p=0.2) between layers
    out_train = gcn_comm_forward(x, adj, params, training=True, seed=1234)
    jax.block_until_ready(out_train)
    assert out_train.shape == (B, N, OUT)
    assert bool(jnp.all(jnp.isfinite(out_train)))

    print("KERNEL_OK")
</pallas_src>

<mosaic_0001>
module attributes {stable_mosaic.version = 11 : i64} {
  func.func @kernel(%arg0: i32, %arg1: memref<2x8x8xf32, #tpu.memory_space<vmem>>, %arg2: memref<2x8x16xf32, #tpu.memory_space<vmem>>, %arg3: memref<16x32xf32, #tpu.memory_space<vmem>>, %arg4: memref<1x32xf32, #tpu.memory_space<vmem>>, %arg5: memref<32x32xf32, #tpu.memory_space<vmem>>, %arg6: memref<1x32xf32, #tpu.memory_space<vmem>>, %arg7: memref<32x16xf32, #tpu.memory_space<vmem>>, %arg8: memref<1x16xf32, #tpu.memory_space<vmem>>, %arg9: memref<2x8x16xf32, #tpu.memory_space<vmem>>) attributes {dimension_semantics = [#tpu.dimension_semantics<arbitrary>], iteration_bounds = array<i64: 1>, scalar_prefetch = 0 : i64, scratch_operands = 0 : i64, tpu.core_type = #tpu.core_type<tc>, window_params = [{pipeline_mode = #tpu.pipeline_mode<synchronous>, transform_indices = @transform_0, window_bounds = array<i64: 2, 8, 8>}, {pipeline_mode = #tpu.pipeline_mode<synchronous>, transform_indices = @transform_1, window_bounds = array<i64: 2, 8, 16>}, {pipeline_mode = #tpu.pipeline_mode<synchronous>, transform_indices = @transform_2, window_bounds = array<i64: 16, 32>}, {pipeline_mode = #tpu.pipeline_mode<synchronous>, transform_indices = @transform_3, window_bounds = array<i64: 1, 32>}, {pipeline_mode = #tpu.pipeline_mode<synchronous>, transform_indices = @transform_4, window_bounds = array<i64: 32, 32>}, {pipeline_mode = #tpu.pipeline_mode<synchronous>, transform_indices = @transform_5, window_bounds = array<i64: 1, 32>}, {pipeline_mode = #tpu.pipeline_mode<synchronous>, transform_indices = @transform_6, window_bounds = array<i64: 32, 16>}, {pipeline_mode = #tpu.pipeline_mode<synchronous>, transform_indices = @transform_7, window_bounds = array<i64: 1, 16>}, {pipeline_mode = #tpu.pipeline_mode<synchronous>, transform_indices = @transform_8, window_bounds = array<i64: 2, 8, 16>}]} {
    %c0 = arith.constant 0 : index
    %c0_0 = arith.constant 0 : index
    %c0_1 = arith.constant 0 : index
    %0 = vector.load %arg1[%c0, %c0_0, %c0_1] : memref<2x8x8xf32, #tpu.memory_space<vmem>>, vector<2x8x8xf32>
    %1 = tpu.iota {dimensions = array<i32: 1>} : vector<2x8x8xi32>
    %2 = tpu.iota {dimensions = array<i32: 2>} : vector<2x8x8xi32>
    %3 = arith.cmpi eq, %1, %2 : vector<2x8x8xi32>
    %cst = arith.constant 0.000000e+00 : f32
    %4 = vector.broadcast %cst : f32 to vector<2x8x8xf32>
    %5 = arith.cmpf one, %0, %4 : vector<2x8x8xf32>
    %cst_2 = arith.constant 1.000000e+00 : f32
    %cst_3 = arith.constant 0.000000e+00 : f32
    %6 = vector.broadcast %cst_2 : f32 to vector<2x8x8xf32>
    %7 = vector.broadcast %cst_3 : f32 to vector<2x8x8xf32>
    %8 = arith.select %5, %6, %7 : vector<2x8x8xi1>, vector<2x8x8xf32>
    %cst_4 = arith.constant 1.000000e+00 : f32
    %9 = vector.broadcast %cst_4 : f32 to vector<2x8x8xf32>
    %10 = arith.select %3, %9, %8 : vector<2x8x8xi1>, vector<2x8x8xf32>
    %cst_5 = arith.constant dense<0.000000e+00> : vector<2x8xf32>
    %11 = vector.multi_reduction <add>, %10, %cst_5 [2] : vector<2x8x8xf32> to vector<2x8xf32>
    %12 = vector.shape_cast %11 : vector<2x8xf32> to vector<2x8x1xf32>
    %13 = math.rsqrt %12 : vector<2x8x1xf32>
    %14 = vector.broadcast %13 : vector<2x8x1xf32> to vector<2x8x8xf32>
    %15 = arith.mulf %14, %10 : vector<2x8x8xf32>
    %c0_6 = arith.constant 0 : index
    %c0_7 = arith.constant 0 : index
    %c0_8 = arith.constant 0 : index
    %16 = vector.load %arg2[%c0_6, %c0_7, %c0_8] : memref<2x8x16xf32, #tpu.memory_space<vmem>>, vector<2x8x16xf32>
    %c0_9 = arith.constant 0 : index
    %c0_10 = arith.constant 0 : index
    %17 = vector.load %arg3[%c0_9, %c0_10] : memref<16x32xf32, #tpu.memory_space<vmem>>, vector<16x32xf32>
    %c0_11 = arith.constant 0 : index
    %c0_12 = arith.constant 0 : index
    %18 = vector.load %arg4[%c0_11, %c0_12] : memref<1x32xf32, #tpu.memory_space<vmem>>, vector<1x32xf32>
    %19 = vector.shape_cast %16 : vector<2x8x16xf32> to vector<16x16xf32>
    %cst_13 = arith.constant dense<0.000000e+00> : vector<16x32xf32>
    %20 = tpu.matmul %19, %17, %cst_13 {dimension_numbers = #tpu.dot_dimension_numbers<[1], [0], [0], [1], [0, 0, 1, 1], [], []>} : vector<16x16xf32>, vector<16x32xf32>, vector<16x32xf32> -> vector<16x32xf32>
    %21 = vector.shape_cast %20 : vector<16x32xf32> to vector<2x8x32xf32>
    %22 = vector.broadcast %13 : vector<2x8x1xf32> to vector<2x8x32xf32>
    %23 = arith.mulf %22, %21 : vector<2x8x32xf32>
    "tpu.trace_start"() <{level = 10 : i32, message = "bij,bjf->bif"}> : () -> ()
    %cst_14 = arith.constant dense<0.000000e+00> : vector<2x8x32xf32>
    %24 = tpu.matmul %15, %23, %cst_14 {dimension_numbers = #tpu.dot_dimension_numbers<[2], [1], [1], [2], [0, 0, 0, 1, 1, 2], [0], [0]>} : vector<2x8x8xf32>, vector<2x8x32xf32>, vector<2x8x32xf32> -> vector<2x8x32xf32>
    "tpu.trace_stop"() : () -> ()
    %25 = vector.shape_cast %18 : vector<1x32xf32> to vector<1x1x32xf32>
    %26 = vector.broadcast %25 : vector<1x1x32xf32> to vector<2x8x32xf32>
    %27 = arith.addf %24, %26 : vector<2x8x32xf32>
    %cst_15 = arith.constant 0.000000e+00 : f32
    %28 = vector.broadcast %cst_15 : f32 to vector<2x8x32xf32>
    %29 = arith.cmpf ogt, %27, %28 : vector<2x8x32xf32>
    %cst_16 = arith.constant 0.000000e+00 : f32
    %30 = vector.broadcast %cst_16 : f32 to vector<2x8x32xf32>
    %31 = arith.minimumf %27, %30 : vector<2x8x32xf32>
    %32 = math.exp %31 : vector<2x8x32xf32>
    %cst_17 = arith.constant 1.000000e+00 : f32
    %33 = vector.broadcast %cst_17 : f32 to vector<2x8x32xf32>
    %34 = arith.subf %32, %33 : vector<2x8x32xf32>
    %35 = arith.select %29, %27, %34 : vector<2x8x32xi1>, vector<2x8x32xf32>
    %c0_18 = arith.constant 0 : index
    %c0_19 = arith.constant 0 : index
    %36 = vector.load %arg5[%c0_18, %c0_19] : memref<32x32xf32, #tpu.memory_space<vmem>>, vector<32x32xf32>
    %c0_20 = arith.constant 0 : index
    %c0_21 = arith.constant 0 : index
    %37 = vector.load %arg6[%c0_20, %c0_21] : memref<1x32xf32, #tpu.memory_space<vmem>>, vector<1x32xf32>
    %38 = vector.shape_cast %35 : vector<2x8x32xf32> to vector<16x32xf32>
    %cst_22 = arith.constant dense<0.000000e+00> : vector<16x32xf32>
    %39 = tpu.matmul %38, %36, %cst_22 {dimension_numbers = #tpu.dot_dimension_numbers<[1], [0], [0], [1], [0, 0, 1, 1], [], []>} : vector<16x32xf32>, vector<32x32xf32>, vector<16x32xf32> -> vector<16x32xf32>
    %40 = vector.shape_cast %39 : vector<16x32xf32> to vector<2x8x32xf32>
    %41 = vector.broadcast %13 : vector<2x8x1xf32> to vector<2x8x32xf32>
    %42 = arith.mulf %41, %40 : vector<2x8x32xf32>
    "tpu.trace_start"() <{level = 10 : i32, message = "bij,bjf->bif"}> : () -> ()
    %cst_23 = arith.constant dense<0.000000e+00> : vector<2x8x32xf32>
    %43 = tpu.matmul %15, %42, %cst_23 {dimension_numbers = #tpu.dot_dimension_numbers<[2], [1], [1], [2], [0, 0, 0, 1, 1, 2], [0], [0]>} : vector<2x8x8xf32>, vector<2x8x32xf32>, vector<2x8x32xf32> -> vector<2x8x32xf32>
    "tpu.trace_stop"() : () -> ()
    %44 = vector.shape_cast %37 : vector<1x32xf32> to vector<1x1x32xf32>
    %45 = vector.broadcast %44 : vector<1x1x32xf32> to vector<2x8x32xf32>
    %46 = arith.addf %43, %45 : vector<2x8x32xf32>
    %cst_24 = arith.constant 0.000000e+00 : f32
    %47 = vector.broadcast %cst_24 : f32 to vector<2x8x32xf32>
    %48 = arith.cmpf ogt, %46, %47 : vector<2x8x32xf32>
    %cst_25 = arith.constant 0.000000e+00 : f32
    %49 = vector.broadcast %cst_25 : f32 to vector<2x8x32xf32>
    %50 = arith.minimumf %46, %49 : vector<2x8x32xf32>
    %51 = math.exp %50 : vector<2x8x32xf32>
    %cst_26 = arith.constant 1.000000e+00 : f32
    %52 = vector.broadcast %cst_26 : f32 to vector<2x8x32xf32>
    %53 = arith.subf %51, %52 : vector<2x8x32xf32>
    %54 = arith.select %48, %46, %53 : vector<2x8x32xi1>, vector<2x8x32xf32>
    %c0_27 = arith.constant 0 : index
    %c0_28 = arith.constant 0 : index
    %55 = vector.load %arg7[%c0_27, %c0_28] : memref<32x16xf32, #tpu.memory_space<vmem>>, vector<32x16xf32>
    %c0_29 = arith.constant 0 : index
    %c0_30 = arith.constant 0 : index
    %56 = vector.load %arg8[%c0_29, %c0_30] : memref<1x16xf32, #tpu.memory_space<vmem>>, vector<1x16xf32>
    %57 = vector.shape_cast %54 : vector<2x8x32xf32> to vector<16x32xf32>
    %cst_31 = arith.constant dense<0.000000e+00> : vector<16x16xf32>
    %58 = tpu.matmul %57, %55, %cst_31 {dimension_numbers = #tpu.dot_dimension_numbers<[1], [0], [0], [1], [0, 0, 1, 1], [], []>} : vector<16x32xf32>, vector<32x16xf32>, vector<16x16xf32> -> vector<16x16xf32>
    %59 = vector.shape_cast %58 : vector<16x16xf32> to vector<2x8x16xf32>
    %60 = vector.broadcast %13 : vector<2x8x1xf32> to vector<2x8x16xf32>
    %61 = arith.mulf %60, %59 : vector<2x8x16xf32>
    "tpu.trace_start"() <{level = 10 : i32, message = "bij,bjf->bif"}> : () -> ()
    %cst_32 = arith.constant dense<0.000000e+00> : vector<2x8x16xf32>
    %62 = tpu.matmul %15, %61, %cst_32 {dimension_numbers = #tpu.dot_dimension_numbers<[2], [1], [1], [2], [0, 0, 0, 1, 1, 2], [0], [0]>} : vector<2x8x8xf32>, vector<2x8x16xf32>, vector<2x8x16xf32> -> vector<2x8x16xf32>
    "tpu.trace_stop"() : () -> ()
    %63 = vector.shape_cast %56 : vector<1x16xf32> to vector<1x1x16xf32>
    %64 = vector.broadcast %63 : vector<1x1x16xf32> to vector<2x8x16xf32>
    %65 = arith.addf %62, %64 : vector<2x8x16xf32>
    %c0_33 = arith.constant 0 : index
    %c0_34 = arith.constant 0 : index
    %c0_35 = arith.constant 0 : index
    %66 = vector.load %arg9[%c0_33, %c0_34, %c0_35] : memref<2x8x16xf32, #tpu.memory_space<vmem>>, vector<2x8x16xf32>
    tpu.vector_store %arg9[%c0_33, %c0_34, %c0_35], %65 {strides = array<i32>} : memref<2x8x16xf32, #tpu.memory_space<vmem>>, vector<2x8x16xf32>,
    return
  }
  func.func @transform_0(%arg0: i32) -> (i32, i32, i32) {
    %c0_i32 = arith.constant 0 : i32
    %c0_i32_0 = arith.constant 0 : i32
    %c0_i32_1 = arith.constant 0 : i32
    %c0_i32_2 = arith.constant 0 : i32
    return %c0_i32, %c0_i32_0, %c0_i32_1 : i32, i32, i32
  }
  func.func @transform_1(%arg0: i32) -> (i32, i32, i32) {
    %c0_i32 = arith.constant 0 : i32
    %c0_i32_0 = arith.constant 0 : i32
    %c0_i32_1 = arith.constant 0 : i32
    %c0_i32_2 = arith.constant 0 : i32
    return %c0_i32, %c0_i32_0, %c0_i32_1 : i32, i32, i32
  }
  func.func @transform_2(%arg0: i32) -> (i32, i32) {
    %c0_i32 = arith.constant 0 : i32
    %c0_i32_0 = arith.constant 0 : i32
    %c0_i32_1 = arith.constant 0 : i32
    return %c0_i32, %c0_i32_0 : i32, i32
  }
  func.func @transform_3(%arg0: i32) -> (i32, i32) {
    %c0_i32 = arith.constant 0 : i32
    %c0_i32_0 = arith.constant 0 : i32
    %c0_i32_1 = arith.constant 0 : i32
    return %c0_i32, %c0_i32_0 : i32, i32
  }
  func.func @transform_4(%arg0: i32) -> (i32, i32) {
    %c0_i32 = arith.constant 0 : i32
    %c0_i32_0 = arith.constant 0 : i32
    %c0_i32_1 = arith.constant 0 : i32
    return %c0_i32, %c0_i32_0 : i32, i32
  }
  func.func @transform_5(%arg0: i32) -> (i32, i32) {
    %c0_i32 = arith.constant 0 : i32
    %c0_i32_0 = arith.constant 0 : i32
    %c0_i32_1 = arith.constant 0 : i32
    return %c0_i32, %c0_i32_0 : i32, i32
  }
  func.func @transform_6(%arg0: i32) -> (i32, i32) {
    %c0_i32 = arith.constant 0 : i32
    %c0_i32_0 = arith.constant 0 : i32
    %c0_i32_1 = arith.constant 0 : i32
    return %c0_i32, %c0_i32_0 : i32, i32
  }
  func.func @transform_7(%arg0: i32) -> (i32, i32) {
    %c0_i32 = arith.constant 0 : i32
    %c0_i32_0 = arith.constant 0 : i32
    %c0_i32_1 = arith.constant 0 : i32
    return %c0_i32, %c0_i32_0 : i32, i32
  }
  func.func @transform_8(%arg0: i32) -> (i32, i32, i32) {
    %c0_i32 = arith.constant 0 : i32
    %c0_i32_0 = arith.constant 0 : i32
    %c0_i32_1 = arith.constant 0 : i32
    %c0_i32_2 = arith.constant 0 : i32
    return %c0_i32, %c0_i32_0, %c0_i32_1 : i32, i32, i32
  }
}

</mosaic_0001>

<llo_original>
// kernel: tpu_custom_call.1
$region0: #{tpu_custom_call.1}
  #allocation0 [shape = 'u32[]', space=smem, size = 0x4, offset = 0x4, fixed_abs, tag = 'smem constant byte address 0x4 - core index']
  #allocation1 [shape = 'u32[144,128]{1,0:T(1,128)}', space=vmem, size = 0x12000, scoped, tag = 'internal scratch']
  %s0 = inlined_call_operand.vmem [shape: f32[2,8,8], index: 0, kind: input, shape index: {}]
  %s1 = inlined_call_operand.hbm [shape: f32[2,8,16], index: 1, kind: input, shape index: {}]
  %s2 = inlined_call_operand.hbm [shape: f32[16,32], index: 2, kind: input, shape index: {}]
  %s3 = inlined_call_operand.vmem [shape: f32[1,32], index: 3, kind: input, shape index: {}]
  %s4 = inlined_call_operand.vmem [shape: f32[32,32], index: 4, kind: input, shape index: {}]
  %s5 = inlined_call_operand.vmem [shape: f32[1,32], index: 5, kind: input, shape index: {}]
  %s6 = inlined_call_operand.vmem [shape: f32[32,16], index: 6, kind: input, shape index: {}]
  %s7 = inlined_call_operand.vmem [shape: f32[1,16], index: 7, kind: input, shape index: {}]
  %s8 = inlined_call_operand.hbm [shape: f32[2,8,16], index: 8, kind: output, shape index: {}]
  %s9 = sld [smem:[#allocation0]]
  $region50: #{tpu_custom_call.1} parent=0
    _
  %s11 = ssub.s32 1, %s9
  %s12 = scalar_select 0, %s11, %s9
  $region1: #{tpu_custom_call.1} parent=0
    #allocation2 [shape = 'u8[8192]{0}', space=vmem, size = 0x2000, scoped, tag = 'input window, operand 1, single buffered']
    #allocation3 [shape = 's32[1]{0}', space=sflag, size = 0x4, scoped, tag = 'scoped memory for tpu_custom_call.1']
    #allocation4 [shape = 's32[1]{0}', space=sflag, size = 0x4, scoped, tag = 'scoped memory for tpu_custom_call.1']
    #allocation5 [shape = 'u8[8192]{0}', space=vmem, size = 0x2000, scoped, tag = 'input window, operand 2, single buffered']
    #allocation6 [shape = 's32[1]{0}', space=sflag, size = 0x4, scoped, tag = 'scoped memory for tpu_custom_call.1']
    #allocation7 [shape = 'u8[8192]{0}', space=vmem, size = 0x2000, scoped, tag = 'output window, operand 0, single buffered']
    %13 = vsyncpa [#allocation3], 0
    %14 = vsyncpa [#allocation6], 0
    %15 = vsyncpa [#allocation4], 0
    // Predicated region
    $region2: #{tpu_custom_call.1} parent=1 // pred_check
      _
    $region3: #{tpu_custom_call.1} parent=1 // pred_check_branch
      %17 = sbr.rel (0) target = $region5
    $region4: #{tpu_custom_call.1} parent=1 // pred_region
      _
    $region5: #{tpu_custom_call.1} parent=1 // pred_fallthru
      _
    // Predicated region
    $region6: #{tpu_custom_call.1} parent=1 // pred_check
      _
    $region7: #{tpu_custom_call.1} parent=1 // pred_check_branch
      %19 = sbr.rel (0) target = $region9
    $region8: #{tpu_custom_call.1} parent=1 // pred_region
      %s21 = ssub.s32 256, 256
      %22 = vsyncadd [#allocation3], %s21
      %s23 = sshll.u32 [#allocation2], 4
      %s24 = int_to_ptr.vmem [resolvable:$true] %s23
      %29 = dma.hbm_to_vmem [thread:$0]  %s1, 256, %s24, [#allocation3], 128, 128, 8
    $region9: #{tpu_custom_call.1} parent=1 // pred_fallthru
      _
    // Predicated region
    $region10: #{tpu_custom_call.1} parent=1 // pred_check
      _
    $region11: #{tpu_custom_call.1} parent=1 // pred_check_branch
      %31 = sbr.rel (0) target = $region13
    $region12: #{tpu_custom_call.1} parent=1 // pred_region
      %s33 = ssub.s32 256, 256
      %34 = vsyncadd [#allocation6], %s33
      %s35 = sshll.u32 [#allocation5], 4
      %s36 = int_to_ptr.vmem [resolvable:$true] %s35
      %41 = dma.hbm_to_vmem [thread:$0]  %s2, 256, %s36, [#allocation6], 128, 128, 8
    $region13: #{tpu_custom_call.1} parent=1 // pred_fallthru
      _
    // Predicated region
    $region14: #{tpu_custom_call.1} parent=1 // pred_check
      _
    $region15: #{tpu_custom_call.1} parent=1 // pred_check_branch
      %43 = sbr.rel (0) target = $region17
    $region16: #{tpu_custom_call.1} parent=1 // pred_region
      _
    $region17: #{tpu_custom_call.1} parent=1 // pred_fallthru
      _
    // Predicated region
    $region18: #{tpu_custom_call.1} parent=1 // pred_check
      _
    $region19: #{tpu_custom_call.1} parent=1 // pred_check_branch
      %45 = sbr.rel (0) target = $region21
    $region20: #{tpu_custom_call.1} parent=1 // pred_region
      _
    $region21: #{tpu_custom_call.1} parent=1 // pred_fallthru
      _
    // Predicated region
    $region22: #{tpu_custom_call.1} parent=1 // pred_check
      _
    $region23: #{tpu_custom_call.1} parent=1 // pred_check_branch
      %47 = sbr.rel (0) target = $region25
    $region24: #{tpu_custom_call.1} parent=1 // pred_region
      _
    $region25: #{tpu_custom_call.1} parent=1 // pred_fallthru
      _
    // Predicated region
    $region26: #{tpu_custom_call.1} parent=1 // pred_check
      _
    $region27: #{tpu_custom_call.1} parent=1 // pred_check_branch
      %49 = sbr.rel (0) target = $region29
    $region28: #{tpu_custom_call.1} parent=1 // pred_region
      _
    $region29: #{tpu_custom_call.1} parent=1 // pred_fallthru
      _
    // Predicated region
    $region30: #{tpu_custom_call.1} parent=1 // pred_check
      _
    $region31: #{tpu_custom_call.1} parent=1 // pred_check_branch
      %51 = sbr.rel (0) target = $region33
    $region32: #{tpu_custom_call.1} parent=1 // pred_region
      _
    $region33: #{tpu_custom_call.1} parent=1 // pred_fallthru
      _
    // Predicated region
    $region34: #{tpu_custom_call.1} parent=1 // pred_check
      _
    $region35: #{tpu_custom_call.1} parent=1 // pred_check_branch
      %53 = sbr.rel (0) target = $region37
    $region36: #{tpu_custom_call.1} parent=1 // pred_region
      %54 = dma.done [#allocation3], 256
    $region37: #{tpu_custom_call.1} parent=1 // pred_fallthru
      _
    // Predicated region
    $region38: #{tpu_custom_call.1} parent=1 // pred_check
      _
    $region39: #{tpu_custom_call.1} parent=1 // pred_check_branch
      %56 = sbr.rel (0) target = $region41
    $region40: #{tpu_custom_call.1} parent=1 // pred_region
      %57 = dma.done [#allocation6], 256
    $region41: #{tpu_custom_call.1} parent=1 // pred_fallthru
      _
    %v58 = vld [vmem:[%s0] sm:$0xff]
    %v59 = vld [vmem:[%s0 + $0x8] sm:$0xff]
    %v60 = vlaneseq
    %v61 = vshrl.u32 %v60, 7
    %v62 = vlaneseq
    %v63 = vand.u32 %v62, 127
    %vm64 = vcmp.eq.s32.totalorder %v61, %v63
    %vm65 = vcmp.ne.f32.partialorder %v58, 0.0
    %vm66 = vcmp.ne.f32.partialorder %v59, 0.0
    %v67 = vsel %vm65, 1.0, 0.0
    %v68 = vsel %vm66, 1.0, 0.0
    %v69 = vsel %vm64, 1.0, %v67
    %v70 = vsel %vm64, 1.0, %v68
    %vm71 = vcmask 64512
    %v72 = vsel %vm71, %v69, 0.0
    %73 = vadd.xlane.f32.xlu0 %v72
    %v74 = vpop.xlane.xlu0 %73
    %v75 = vsel %vm71, %v70, 0.0
    %76 = vadd.xlane.f32.xlu0 %v75
    %v77 = vpop.xlane.xlu0 %76
    %v78 = vrsqrt.pop %v74
    %v79 = vrsqrt.pop %v77
    %v80 = vmul.f32 %v78, %v69
    %v81 = vmul.f32 %v79, %v70
    %v82 = vld [vmem:[#allocation2] sm:$0xff]
    %v83 = vld [vmem:[#allocation2 + $0x8] sm:$0xff]
    %v84 = vld [vmem:[#allocation5] sm:$0xff]
    %v85 = vld [vmem:[#allocation5 + $0x8] sm:$0xff]
    %v86 = vld [vmem:[%s3] sm:$0x1]
    %vm87 = vcmask 130048
    %v89 = vsel %vm87, %v82, 0
    %v92 = vsel %vm87, %v83, 0
    %94 = vmatprep.subr.mxu0 0.0
    %95 = vmatpush1.msra.mxu0 %v84
    %96 = vmatprep.subr.mxu0 0.0
    %97 = vmatpush1.msra.mxu0 %v85
    %98 = vmatprep.subr.mxu0 0.0
    %99 = vmatpush1.msra.mxu0 0.0
    %100 = vmatprep.subr.mxu0 0.0
    %101 = vmatpush1.msra.mxu0 0.0
    %102 = vmatprep.subr.mxu0 0.0
    %103 = vmatpush1.msra.mxu0 0.0
    %104 = vmatprep.subr.mxu0 0.0
    %105 = vmatpush1.msra.mxu0 0.0
    %106 = vmatprep.subr.mxu0 0.0
    %107 = vmatpush1.msra.mxu0 0.0
    %108 = vmatprep.subr.mxu0 0.0
    %109 = vmatpush1.msra.mxu0 0.0
    %110 = vmatprep.subr.mxu0 0.0
    %111 = vmatpush1.msra.mxu0 0.0
    %112 = vmatprep.subr.mxu0 0.0
    %113 = vmatpush1.msra.mxu0 0.0
    %114 = vmatprep.subr.mxu0 0.0
    %115 = vmatpush1.msra.mxu0 0.0
    %116 = vmatprep.subr.mxu0 0.0
    %117 = vmatpush1.msra.mxu0 0.0
    %118 = vmatprep.subr.mxu0 0.0
    %119 = vmatpush1.msra.mxu0 0.0
    %120 = vmatprep.subr.mxu0 0.0
    %121 = vmatpush1.msra.mxu0 0.0
    %122 = vmatprep.subr.mxu0 0.0
    %123 = vmatpush1.msra.mxu0 0.0
    %124 = vmatprep.subr.mxu0 0.0
    %125 = vmatpush1.msra.mxu0 0.0
    %126 = vmatprep.subr.mxu0 0.0
    %127 = vmatpush1.msra.mxu0 0.0
    %128 = vmatprep.subr.mxu0 0.0
    %129 = vmatpush1.msra.mxu0 0.0
    %130 = vmatprep.subr.mxu0 0.0
    %131 = vmatpush1.msra.mxu0 0.0
    %132 = vmatprep.subr.mxu0 0.0
    %133 = vmatpush1.msra.mxu0 0.0
    %134 = vmatprep.subr.mxu0 0.0
    %135 = vmatpush1.msra.mxu0 0.0
    %136 = vmatprep.subr.mxu0 0.0
    %137 = vmatpush1.msra.mxu0 0.0
    %138 = vmatprep.subr.mxu0 0.0
    %139 = vmatpush1.msra.mxu0 0.0
    %140 = vmatprep.subr.mxu0 0.0
    %141 = vmatpush1.msra.mxu0 0.0
    %142 = vmatprep.subr.mxu0 0.0
    %143 = vmatpush1.msra.mxu0 0.0
    %144 = vmatprep.subr.mxu0 0.0
    %145 = vmatpush1.msra.mxu0 0.0
    %146 = vmatprep.subr.mxu0 0.0
    %147 = vmatpush1.msra.mxu0 0.0
    %148 = vmatprep.subr.mxu0 0.0
    %149 = vmatpush1.msra.mxu0 0.0
    %150 = vmatprep.subr.mxu0 0.0
    %151 = vmatpush1.msra.mxu0 0.0
    %152 = vmatprep.subr.mxu0 0.0
    %153 = vmatpush1.msra.mxu0 0.0
    %154 = vmatprep.subr.mxu0 0.0
    %155 = vmatpush1.msra.mxu0 0.0
    %156 = vmatprep.subr.mxu0 0.0
    %157 = vmatpush1.msra.mxu0 0.0
    %158 = vmatprep.mubr.f32.mxu0 0.0
    %159 = vmatmul.mubr.f32.gmra.mrb[0].mxu0 %v89
    %v160 = vpop.f32.mrb[0].mxu0
    %v161 = vadd.f32 0.0, %v160
    %v162 = vpop.f32.mrb[0].mxu0
    %163 = vmatprep.mubr.f32.mxu0 0.0
    %164 = vmatmul.mubr.f32.gmra.mrb[0].mxu0 %v92
    %v165 = vpop.f32.mrb[0].mxu0
    %v166 = vadd.f32 0.0, %v165
    %v167 = vpop.f32.mrb[0].mxu0
    %168 = vdwg.mxu0
    %v169 = vmul.f32 %v78, %v161
    %v170 = vmul.f32 %v79, %v166
    %v172 = vlaneseq
    %v173 = vshrl.u32 %v172, 7
    %v174 = vsub.s32 0, %v173
    %v175 = vrot.slane %v86, %v174
    %v178 = vsel %vm71, %v80, 0
    %180 = vmatprep.subr.mxu0 0.0
    %181 = vmatpush1.msra.mxu0 %v169
    %182 = vmatprep.subr.mxu0 0.0
    %183 = vmatpush1.msra.mxu0 0.0
    %184 = vmatprep.subr.mxu0 0.0
    %185 = vmatpush1.msra.mxu0 0.0
    %186 = vmatprep.subr.mxu0 0.0
    %187 = vmatpush1.msra.mxu0 0.0
    %188 = vmatprep.subr.mxu0 0.0
    %189 = vmatpush1.msra.mxu0 0.0
    %190 = vmatprep.subr.mxu0 0.0
    %191 = vmatpush1.msra.mxu0 0.0
    %192 = vmatprep.subr.mxu0 0.0
    %193 = vmatpush1.msra.mxu0 0.0
    %194 = vmatprep.subr.mxu0 0.0
    %195 = vmatpush1.msra.mxu0 0.0
    %196 = vmatprep.subr.mxu0 0.0
    %197 = vmatpush1.msra.mxu0 0.0
    %198 = vmatprep.subr.mxu0 0.0
    %199 = vmatpush1.msra.mxu0 0.0
    %200 = vmatprep.subr.mxu0 0.0
    %201 = vmatpush1.msra.mxu0 0.0
    %202 = vmatprep.subr.mxu0 0.0
    %203 = vmatpush1.msra.mxu0 0.0
    %204 = vmatprep.subr.mxu0 0.0
    %205 = vmatpush1.msra.mxu0 0.0
    %206 = vmatprep.subr.mxu0 0.0
    %207 = vmatpush1.msra.mxu0 0.0
    %208 = vmatprep.subr.mxu0 0.0
    %209 = vmatpush1.msra.mxu0 0.0
    %210 = vmatprep.subr.mxu0 0.0
    %211 = vmatpush1.msra.mxu0 0.0
    %212 = vmatprep.subr.mxu0 0.0
    %213 = vmatpush1.msra.mxu0 0.0
    %214 = vmatprep.subr.mxu0 0.0
    %215 = vmatpush1.msra.mxu0 0.0
    %216 = vmatprep.subr.mxu0 0.0
    %217 = vmatpush1.msra.mxu0 0.0
    %218 = vmatprep.subr.mxu0 0.0
    %219 = vmatpush1.msra.mxu0 0.0
    %220 = vmatprep.subr.mxu0 0.0
    %221 = vmatpush1.msra.mxu0 0.0
    %222 = vmatprep.subr.mxu0 0.0
    %223 = vmatpush1.msra.mxu0 0.0
    %224 = vmatprep.subr.mxu0 0.0
    %225 = vmatpush1.msra.mxu0 0.0
    %226 = vmatprep.subr.mxu0 0.0
    %227 = vmatpush1.msra.mxu0 0.0
    %228 = vmatprep.subr.mxu0 0.0
    %229 = vmatpush1.msra.mxu0 0.0
    %230 = vmatprep.subr.mxu0 0.0
    %231 = vmatpush1.msra.mxu0 0.0
    %232 = vmatprep.subr.mxu0 0.0
    %233 = vmatpush1.msra.mxu0 0.0
    %234 = vmatprep.subr.mxu0 0.0
    %235 = vmatpush1.msra.mxu0 0.0
    %236 = vmatprep.subr.mxu0 0.0
    %237 = vmatpush1.msra.mxu0 0.0
    %238 = vmatprep.subr.mxu0 0.0
    %239 = vmatpush1.msra.mxu0 0.0
    %240 = vmatprep.subr.mxu0 0.0
    %241 = vmatpush1.msra.mxu0 0.0
    %242 = vmatprep.subr.mxu0 0.0
    %243 = vmatpush1.msra.mxu0 0.0
    %244 = vmatprep.mubr.f32.mxu0 0.0
    %245 = vmatmul.mubr.f32.gmra.mrb[0].mxu0 %v178
    %v246 = vpop.f32.mrb[0].mxu0
    %v247 = vadd.f32 %v175, %v246
    %v248 = vpop.f32.mrb[0].mxu0
    %249 = vdwg.mxu0
    %v251 = vsel %vm71, %v81, 0
    %253 = vmatprep.subr.mxu0 0.0
    %254 = vmatpush1.msra.mxu0 %v170
    %255 = vmatprep.subr.mxu0 0.0
    %256 = vmatpush1.msra.mxu0 0.0
    %257 = vmatprep.subr.mxu0 0.0
    %258 = vmatpush1.msra.mxu0 0.0
    %259 = vmatprep.subr.mxu0 0.0
    %260 = vmatpush1.msra.mxu0 0.0
    %261 = vmatprep.subr.mxu0 0.0
    %262 = vmatpush1.msra.mxu0 0.0
    %263 = vmatprep.subr.mxu0 0.0
    %264 = vmatpush1.msra.mxu0 0.0
    %265 = vmatprep.subr.mxu0 0.0
    %266 = vmatpush1.msra.mxu0 0.0
    %267 = vmatprep.subr.mxu0 0.0
    %268 = vmatpush1.msra.mxu0 0.0
    %269 = vmatprep.subr.mxu0 0.0
    %270 = vmatpush1.msra.mxu0 0.0
    %271 = vmatprep.subr.mxu0 0.0
    %272 = vmatpush1.msra.mxu0 0.0
    %273 = vmatprep.subr.mxu0 0.0
    %274 = vmatpush1.msra.mxu0 0.0
    %275 = vmatprep.subr.mxu0 0.0
    %276 = vmatpush1.msra.mxu0 0.0
    %277 = vmatprep.subr.mxu0 0.0
    %278 = vmatpush1.msra.mxu0 0.0
    %279 = vmatprep.subr.mxu0 0.0
    %280 = vmatpush1.msra.mxu0 0.0
    %281 = vmatprep.subr.mxu0 0.0
    %282 = vmatpush1.msra.mxu0 0.0
    %283 = vmatprep.subr.mxu0 0.0
    %284 = vmatpush1.msra.mxu0 0.0
    %285 = vmatprep.subr.mxu0 0.0
    %286 = vmatpush1.msra.mxu0 0.0
    %287 = vmatprep.subr.mxu0 0.0
    %288 = vmatpush1.msra.mxu0 0.0
    %289 = vmatprep.subr.mxu0 0.0
    %290 = vmatpush1.msra.mxu0 0.0
    %291 = vmatprep.subr.mxu0 0.0
    %292 = vmatpush1.msra.mxu0 0.0
    %293 = vmatprep.subr.mxu0 0.0
    %294 = vmatpush1.msra.mxu0 0.0
    %295 = vmatprep.subr.mxu0 0.0
    %296 = vmatpush1.msra.mxu0 0.0
    %297 = vmatprep.subr.mxu0 0.0
    %298 = vmatpush1.msra.mxu0 0.0
    %299 = vmatprep.subr.mxu0 0.0
    %300 = vmatpush1.msra.mxu0 0.0
    %301 = vmatprep.subr.mxu0 0.0
    %302 = vmatpush1.msra.mxu0 0.0
    %303 = vmatprep.subr.mxu0 0.0
    %304 = vmatpush1.msra.mxu0 0.0
    %305 = vmatprep.subr.mxu0 0.0
    %306 = vmatpush1.msra.mxu0 0.0
    %307 = vmatprep.subr.mxu0 0.0
    %308 = vmatpush1.msra.mxu0 0.0
    %309 = vmatprep.subr.mxu0 0.0
    %310 = vmatpush1.msra.mxu0 0.0
    %311 = vmatprep.subr.mxu0 0.0
    %312 = vmatpush1.msra.mxu0 0.0
    %313 = vmatprep.subr.mxu0 0.0
    %314 = vmatpush1.msra.mxu0 0.0
    %315 = vmatprep.subr.mxu0 0.0
    %316 = vmatpush1.msra.mxu0 0.0
    %317 = vmatprep.mubr.f32.mxu0 0.0
    %318 = vmatmul.mubr.f32.gmra.mrb[0].mxu0 %v251
    %v319 = vpop.f32.mrb[0].mxu0
    %v320 = vadd.f32 %v175, %v319
    %v321 = vpop.f32.mrb[0].mxu0
    %322 = vdwg.mxu0
    %vm323 = vcmp.gt.f32.partialorder %v247, 0.0
    %vm324 = vcmp.gt.f32.partialorder %v320, 0.0
    %v325 = vmin.f32 %v247, 0.0
    %v326 = vmin.f32 %v320, 0.0
    %v327 = vmul.f32 %v325, 1.442695
    %v328 = vpow.pop %v327
    %v329 = vmul.f32 %v326, 1.442695
    %v330 = vpow.pop %v329
    %v331 = vsub.f32 %v328, 1.0
    %v332 = vsub.f32 %v330, 1.0
    %v333 = vsel %vm323, %v247, %v331
    %v334 = vsel %vm324, %v320, %v332
    %v335 = vld [vmem:[%s4] sm:$0xff]
    %v336 = vld [vmem:[%s4 + $0x8] sm:$0xff]
    %v337 = vld [vmem:[%s4 + $0x10] sm:$0xff]
    %v338 = vld [vmem:[%s4 + $0x18] sm:$0xff]
    %v339 = vld [vmem:[%s5] sm:$0x1]
    %vm340 = vcmask 261120
    %v342 = vsel %vm340, %v333, 0
    %v345 = vsel %vm340, %v334, 0
    %347 = vmatprep.subr.mxu0 0.0
    %348 = vmatpush1.msra.mxu0 %v335
    %349 = vmatprep.subr.mxu0 0.0
    %350 = vmatpush1.msra.mxu0 %v336
    %351 = vmatprep.subr.mxu0 0.0
    %352 = vmatpush1.msra.mxu0 %v337
    %353 = vmatprep.subr.mxu0 0.0
    %354 = vmatpush1.msra.mxu0 %v338
    %355 = vmatprep.subr.mxu0 0.0
    %356 = vmatpush1.msra.mxu0 0.0
    %357 = vmatprep.subr.mxu0 0.0
    %358 = vmatpush1.msra.mxu0 0.0
    %359 = vmatprep.subr.mxu0 0.0
    %360 = vmatpush1.msra.mxu0 0.0
    %361 = vmatprep.subr.mxu0 0.0
    %362 = vmatpush1.msra.mxu0 0.0
    %363 = vmatprep.subr.mxu0 0.0
    %364 = vmatpush1.msra.mxu0 0.0
    %365 = vmatprep.subr.mxu0 0.0
    %366 = vmatpush1.msra.mxu0 0.0
    %367 = vmatprep.subr.mxu0 0.0
    %368 = vmatpush1.msra.mxu0 0.0
    %369 = vmatprep.subr.mxu0 0.0
    %370 = vmatpush1.msra.mxu0 0.0
    %371 = vmatprep.subr.mxu0 0.0
    %372 = vmatpush1.msra.mxu0 0.0
    %373 = vmatprep.subr.mxu0 0.0
    %374 = vmatpush1.msra.mxu0 0.0
    %375 = vmatprep.subr.mxu0 0.0
    %376 = vmatpush1.msra.mxu0 0.0
    %377 = vmatprep.subr.mxu0 0.0
    %378 = vmatpush1.msra.mxu0 0.0
    %379 = vmatprep.subr.mxu0 0.0
    %380 = vmatpush1.msra.mxu0 0.0
    %381 = vmatprep.subr.mxu0 0.0
    %382 = vmatpush1.msra.mxu0 0.0
    %383 = vmatprep.subr.mxu0 0.0
    %384 = vmatpush1.msra.mxu0 0.0
    %385 = vmatprep.subr.mxu0 0.0
    %386 = vmatpush1.msra.mxu0 0.0
    %387 = vmatprep.subr.mxu0 0.0
    %388 = vmatpush1.msra.mxu0 0.0
    %389 = vmatprep.subr.mxu0 0.0
    %390 = vmatpush1.msra.mxu0 0.0
    %391 = vmatprep.subr.mxu0 0.0
    %392 = vmatpush1.msra.mxu0 0.0
    %393 = vmatprep.subr.mxu0 0.0
    %394 = vmatpush1.msra.mxu0 0.0
    %395 = vmatprep.subr.mxu0 0.0
    %396 = vmatpush1.msra.mxu0 0.0
    %397 = vmatprep.subr.mxu0 0.0
    %398 = vmatpush1.msra.mxu0 0.0
    %399 = vmatprep.subr.mxu0 0.0
    %400 = vmatpush1.msra.mxu0 0.0
    %401 = vmatprep.subr.mxu0 0.0
    %402 = vmatpush1.msra.mxu0 0.0
    %403 = vmatprep.subr.mxu0 0.0
    %404 = vmatpush1.msra.mxu0 0.0
    %405 = vmatprep.subr.mxu0 0.0
    %406 = vmatpush1.msra.mxu0 0.0
    %407 = vmatprep.subr.mxu0 0.0
    %408 = vmatpush1.msra.mxu0 0.0
    %409 = vmatprep.subr.mxu0 0.0
    %410 = vmatpush1.msra.mxu0 0.0
    %411 = vmatprep.mubr.f32.mxu0 0.0
    %412 = vmatmul.mubr.f32.gmra.mrb[0].mxu0 %v342
    %v413 = vpop.f32.mrb[0].mxu0
    %v414 = vadd.f32 0.0, %v413
    %v415 = vpop.f32.mrb[0].mxu0
    %416 = vmatprep.mubr.f32.mxu0 0.0
    %417 = vmatmul.mubr.f32.gmra.mrb[0].mxu0 %v345
    %v418 = vpop.f32.mrb[0].mxu0
    %v419 = vadd.f32 0.0, %v418
    %v420 = vpop.f32.mrb[0].mxu0
    %421 = vdwg.mxu0
    %v422 = vmul.f32 %v78, %v414
    %v423 = vmul.f32 %v79, %v419
    %v425 = vlaneseq
    %v426 = vshrl.u32 %v425, 7
    %v427 = vsub.s32 0, %v426
    %v428 = vrot.slane %v339, %v427
    %430 = vmatprep.subr.mxu0 0.0
    %431 = vmatpush1.msra.mxu0 %v422
    %432 = vmatprep.subr.mxu0 0.0
    %433 = vmatpush1.msra.mxu0 0.0
    %434 = vmatprep.subr.mxu0 0.0
    %435 = vmatpush1.msra.mxu0 0.0
    %436 = vmatprep.subr.mxu0 0.0
    %437 = vmatpush1.msra.mxu0 0.0
    %438 = vmatprep.subr.mxu0 0.0
    %439 = vmatpush1.msra.mxu0 0.0
    %440 = vmatprep.subr.mxu0 0.0
    %441 = vmatpush1.msra.mxu0 0.0
    %442 = vmatprep.subr.mxu0 0.0
    %443 = vmatpush1.msra.mxu0 0.0
    %444 = vmatprep.subr.mxu0 0.0
    %445 = vmatpush1.msra.mxu0 0.0
    %446 = vmatprep.subr.mxu0 0.0
    %447 = vmatpush1.msra.mxu0 0.0
    %448 = vmatprep.subr.mxu0 0.0
    %449 = vmatpush1.msra.mxu0 0.0
    %450 = vmatprep.subr.mxu0 0.0
    %451 = vmatpush1.msra.mxu0 0.0
    %452 = vmatprep.subr.mxu0 0.0
    %453 = vmatpush1.msra.mxu0 0.0
    %454 = vmatprep.subr.mxu0 0.0
    %455 = vmatpush1.msra.mxu0 0.0
    %456 = vmatprep.subr.mxu0 0.0
    %457 = vmatpush1.msra.mxu0 0.0
    %458 = vmatprep.subr.mxu0 0.0
    %459 = vmatpush1.msra.mxu0 0.0
    %460 = vmatprep.subr.mxu0 0.0
    %461 = vmatpush1.msra.mxu0 0.0
    %462 = vmatprep.subr.mxu0 0.0
    %463 = vmatpush1.msra.mxu0 0.0
    %464 = vmatprep.subr.mxu0 0.0
    %465 = vmatpush1.msra.mxu0 0.0
    %466 = vmatprep.subr.mxu0 0.0
    %467 = vmatpush1.msra.mxu0 0.0
    %468 = vmatprep.subr.mxu0 0.0
    %469 = vmatpush1.msra.mxu0 0.0
    %470 = vmatprep.subr.mxu0 0.0
    %471 = vmatpush1.msra.mxu0 0.0
    %472 = vmatprep.subr.mxu0 0.0
    %473 = vmatpush1.msra.mxu0 0.0
    %474 = vmatprep.subr.mxu0 0.0
    %475 = vmatpush1.msra.mxu0 0.0
    %476 = vmatprep.subr.mxu0 0.0
    %477 = vmatpush1.msra.mxu0 0.0
    %478 = vmatprep.subr.mxu0 0.0
    %479 = vmatpush1.msra.mxu0 0.0
    %480 = vmatprep.subr.mxu0 0.0
    %481 = vmatpush1.msra.mxu0 0.0
    %482 = vmatprep.subr.mxu0 0.0
    %483 = vmatpush1.msra.mxu0 0.0
    %484 = vmatprep.subr.mxu0 0.0
    %485 = vmatpush1.msra.mxu0 0.0
    %486 = vmatprep.subr.mxu0 0.0
    %487 = vmatpush1.msra.mxu0 0.0
    %488 = vmatprep.subr.mxu0 0.0
    %489 = vmatpush1.msra.mxu0 0.0
    %490 = vmatprep.subr.mxu0 0.0
    %491 = vmatpush1.msra.mxu0 0.0
    %492 = vmatprep.subr.mxu0 0.0
    %493 = vmatpush1.msra.mxu0 0.0
    %494 = vmatprep.mubr.f32.mxu0 0.0
    %495 = vmatmul.mubr.f32.gmra.mrb[0].mxu0 %v178
    %v496 = vpop.f32.mrb[0].mxu0
    %v497 = vadd.f32 %v428, %v496
    %v498 = vpop.f32.mrb[0].mxu0
    %499 = vdwg.mxu0
    %500 = vmatprep.subr.mxu0 0.0
    %501 = vmatpush1.msra.mxu0 %v423
    %502 = vmatprep.subr.mxu0 0.0
    %503 = vmatpush1.msra.mxu0 0.0
    %504 = vmatprep.subr.mxu0 0.0
    %505 = vmatpush1.msra.mxu0 0.0
    %506 = vmatprep.subr.mxu0 0.0
    %507 = vmatpush1.msra.mxu0 0.0
    %508 = vmatprep.subr.mxu0 0.0
    %509 = vmatpush1.msra.mxu0 0.0
    %510 = vmatprep.subr.mxu0 0.0
    %511 = vmatpush1.msra.mxu0 0.0
    %512 = vmatprep.subr.mxu0 0.0
    %513 = vmatpush1.msra.mxu0 0.0
    %514 = vmatprep.subr.mxu0 0.0
    %515 = vmatpush1.msra.mxu0 0.0
    %516 = vmatprep.subr.mxu0 0.0
    %517 = vmatpush1.msra.mxu0 0.0
    %518 = vmatprep.subr.mxu0 0.0
    %519 = vmatpush1.msra.mxu0 0.0
    %520 = vmatprep.subr.mxu0 0.0
    %521 = vmatpush1.msra.mxu0 0.0
    %522 = vmatprep.subr.mxu0 0.0
    %523 = vmatpush1.msra.mxu0 0.0
    %524 = vmatprep.subr.mxu0 0.0
    %525 = vmatpush1.msra.mxu0 0.0
    %526 = vmatprep.subr.mxu0 0.0
    %527 = vmatpush1.msra.mxu0 0.0
    %528 = vmatprep.subr.mxu0 0.0
    %529 = vmatpush1.msra.mxu0 0.0
    %530 = vmatprep.subr.mxu0 0.0
    %531 = vmatpush1.msra.mxu0 0.0
    %532 = vmatprep.subr.mxu0 0.0
    %533 = vmatpush1.msra.mxu0 0.0
    %534 = vmatprep.subr.mxu0 0.0
    %535 = vmatpush1.msra.mxu0 0.0
    %536 = vmatprep.subr.mxu0 0.0
    %537 = vmatpush1.msra.mxu0 0.0
    %538 = vmatprep.subr.mxu0 0.0
    %539 = vmatpush1.msra.mxu0 0.0
    %540 = vmatprep.subr.mxu0 0.0
    %541 = vmatpush1.msra.mxu0 0.0
    %542 = vmatprep.subr.mxu0 0.0
    %543 = vmatpush1.msra.mxu0 0.0
    %544 = vmatprep.subr.mxu0 0.0
    %545 = vmatpush1.msra.mxu0 0.0
    %546 = vmatprep.subr.mxu0 0.0
    %547 = vmatpush1.msra.mxu0 0.0
    %548 = vmatprep.subr.mxu0 0.0
    %549 = vmatpush1.msra.mxu0 0.0
    %550 = vmatprep.subr.mxu0 0.0
    %551 = vmatpush1.msra.mxu0 0.0
    %552 = vmatprep.subr.mxu0 0.0
    %553 = vmatpush1.msra.mxu0 0.0
    %554 = vmatprep.subr.mxu0 0.0
    %555 = vmatpush1.msra.mxu0 0.0
    %556 = vmatprep.subr.mxu0 0.0
    %557 = vmatpush1.msra.mxu0 0.0
    %558 = vmatprep.subr.mxu0 0.0
    %559 = vmatpush1.msra.mxu0 0.0
    %560 = vmatprep.subr.mxu0 0.0
    %561 = vmatpush1.msra.mxu0 0.0
    %562 = vmatprep.subr.mxu0 0.0
    %563 = vmatpush1.msra.mxu0 0.0
    %564 = vmatprep.mubr.f32.mxu0 0.0
    %565 = vmatmul.mubr.f32.gmra.mrb[0].mxu0 %v251
    %v566 = vpop.f32.mrb[0].mxu0
    %v567 = vadd.f32 %v428, %v566
    %v568 = vpop.f32.mrb[0].mxu0
    %569 = vdwg.mxu0
    %vm570 = vcmp.gt.f32.partialorder %v497, 0.0
    %vm571 = vcmp.gt.f32.partialorder %v567, 0.0
    %v572 = vmin.f32 %v497, 0.0
    %v573 = vmin.f32 %v567, 0.0
    %v574 = vmul.f32 %v572, 1.442695
    %v575 = vpow.pop %v574
    %v576 = vmul.f32 %v573, 1.442695
    %v577 = vpow.pop %v576
    %v578 = vsub.f32 %v575, 1.0
    %v579 = vsub.f32 %v577, 1.0
    %v580 = vsel %vm570, %v497, %v578
    %v581 = vsel %vm571, %v567, %v579
    %v582 = vld [vmem:[%s6] sm:$0xff]
    %v583 = vld [vmem:[%s6 + $0x8] sm:$0xff]
    %v584 = vld [vmem:[%s6 + $0x10] sm:$0xff]
    %v585 = vld [vmem:[%s6 + $0x18] sm:$0xff]
    %v586 = vld [vmem:[%s7] sm:$0x1]
    %v588 = vsel %vm340, %v580, 0
    %v591 = vsel %vm340, %v581, 0
    %593 = vmatprep.subr.mxu0 0.0
    %594 = vmatpush1.msra.mxu0 %v582
    %595 = vmatprep.subr.mxu0 0.0
    %596 = vmatpush1.msra.mxu0 %v583
    %597 = vmatprep.subr.mxu0 0.0
    %598 = vmatpush1.msra.mxu0 %v584
    %599 = vmatprep.subr.mxu0 0.0
    %600 = vmatpush1.msra.mxu0 %v585
    %601 = vmatprep.subr.mxu0 0.0
    %602 = vmatpush1.msra.mxu0 0.0
    %603 = vmatprep.subr.mxu0 0.0
    %604 = vmatpush1.msra.mxu0 0.0
    %605 = vmatprep.subr.mxu0 0.0
    %606 = vmatpush1.msra.mxu0 0.0
    %607 = vmatprep.subr.mxu0 0.0
    %608 = vmatpush1.msra.mxu0 0.0
    %609 = vmatprep.subr.mxu0 0.0
    %610 = vmatpush1.msra.mxu0 0.0
    %611 = vmatprep.subr.mxu0 0.0
    %612 = vmatpush1.msra.mxu0 0.0
    %613 = vmatprep.subr.mxu0 0.0
    %614 = vmatpush1.msra.mxu0 0.0
    %615 = vmatprep.subr.mxu0 0.0
    %616 = vmatpush1.msra.mxu0 0.0
    %617 = vmatprep.subr.mxu0 0.0
    %618 = vmatpush1.msra.mxu0 0.0
    %619 = vmatprep.subr.mxu0 0.0
    %620 = vmatpush1.msra.mxu0 0.0
    %621 = vmatprep.subr.mxu0 0.0
    %622 = vmatpush1.msra.mxu0 0.0
    %623 = vmatprep.subr.mxu0 0.0
    %624 = vmatpush1.msra.mxu0 0.0
    %625 = vmatprep.subr.mxu0 0.0
    %626 = vmatpush1.msra.mxu0 0.0
    %627 = vmatprep.subr.mxu0 0.0
    %628 = vmatpush1.msra.mxu0 0.0
    %629 = vmatprep.subr.mxu0 0.0
    %630 = vmatpush1.msra.mxu0 0.0
    %631 = vmatprep.subr.mxu0 0.0
    %632 = vmatpush1.msra.mxu0 0.0
    %633 = vmatprep.subr.mxu0 0.0
    %634 = vmatpush1.msra.mxu0 0.0
    %635 = vmatprep.subr.mxu0 0.0
    %636 = vmatpush1.msra.mxu0 0.0
    %637 = vmatprep.subr.mxu0 0.0
    %638 = vmatpush1.msra.mxu0 0.0
    %639 = vmatprep.subr.mxu0 0.0
    %640 = vmatpush1.msra.mxu0 0.0
    %641 = vmatprep.subr.mxu0 0.0
    %642 = vmatpush1.msra.mxu0 0.0
    %643 = vmatprep.subr.mxu0 0.0
    %644 = vmatpush1.msra.mxu0 0.0
    %645 = vmatprep.subr.mxu0 0.0
    %646 = vmatpush1.msra.mxu0 0.0
    %647 = vmatprep.subr.mxu0 0.0
    %648 = vmatpush1.msra.mxu0 0.0
    %649 = vmatprep.subr.mxu0 0.0
    %650 = vmatpush1.msra.mxu0 0.0
    %651 = vmatprep.subr.mxu0 0.0
    %652 = vmatpush1.msra.mxu0 0.0
    %653 = vmatprep.subr.mxu0 0.0
    %654 = vmatpush1.msra.mxu0 0.0
    %655 = vmatprep.subr.mxu0 0.0
    %656 = vmatpush1.msra.mxu0 0.0
    %657 = vmatprep.mubr.f32.mxu0 0.0
    %658 = vmatmul.mubr.f32.gmra.mrb[0].mxu0 %v588
    %v659 = vpop.f32.mrb[0].mxu0
    %v660 = vadd.f32 0.0, %v659
    %v661 = vpop.f32.mrb[0].mxu0
    %662 = vmatprep.mubr.f32.mxu0 0.0
    %663 = vmatmul.mubr.f32.gmra.mrb[0].mxu0 %v591
    %v664 = vpop.f32.mrb[0].mxu0
    %v665 = vadd.f32 0.0, %v664
    %v666 = vpop.f32.mrb[0].mxu0
    %667 = vdwg.mxu0
    %v668 = vmul.f32 %v78, %v660
    %v669 = vmul.f32 %v79, %v665
    %v671 = vlaneseq
    %v672 = vshrl.u32 %v671, 7
    %v673 = vsub.s32 0, %v672
    %v674 = vrot.slane %v586, %v673
    %676 = vmatprep.subr.mxu0 0.0
    %677 = vmatpush1.msra.mxu0 %v668
    %678 = vmatprep.subr.mxu0 0.0
    %679 = vmatpush1.msra.mxu0 0.0
    %680 = vmatprep.subr.mxu0 0.0
    %681 = vmatpush1.msra.mxu0 0.0
    %682 = vmatprep.subr.mxu0 0.0
    %683 = vmatpush1.msra.mxu0 0.0
    %684 = vmatprep.subr.mxu0 0.0
    %685 = vmatpush1.msra.mxu0 0.0
    %686 = vmatprep.subr.mxu0 0.0
    %687 = vmatpush1.msra.mxu0 0.0
    %688 = vmatprep.subr.mxu0 0.0
    %689 = vmatpush1.msra.mxu0 0.0
    %690 = vmatprep.subr.mxu0 0.0
    %691 = vmatpush1.msra.mxu0 0.0
    %692 = vmatprep.subr.mxu0 0.0
    %693 = vmatpush1.msra.mxu0 0.0
    %694 = vmatprep.subr.mxu0 0.0
    %695 = vmatpush1.msra.mxu0 0.0
    %696 = vmatprep.subr.mxu0 0.0
    %697 = vmatpush1.msra.mxu0 0.0
    %698 = vmatprep.subr.mxu0 0.0
    %699 = vmatpush1.msra.mxu0 0.0
    %700 = vmatprep.subr.mxu0 0.0
    %701 = vmatpush1.msra.mxu0 0.0
    %702 = vmatprep.subr.mxu0 0.0
    %703 = vmatpush1.msra.mxu0 0.0
    %704 = vmatprep.subr.mxu0 0.0
    %705 = vmatpush1.msra.mxu0 0.0
    %706 = vmatprep.subr.mxu0 0.0
    %707 = vmatpush1.msra.mxu0 0.0
    %708 = vmatprep.subr.mxu0 0.0
    %709 = vmatpush1.msra.mxu0 0.0
    %710 = vmatprep.subr.mxu0 0.0
    %711 = vmatpush1.msra.mxu0 0.0
    %712 = vmatprep.subr.mxu0 0.0
    %713 = vmatpush1.msra.mxu0 0.0
    %714 = vmatprep.subr.mxu0 0.0
    %715 = vmatpush1.msra.mxu0 0.0
    %716 = vmatprep.subr.mxu0 0.0
    %717 = vmatpush1.msra.mxu0 0.0
    %718 = vmatprep.subr.mxu0 0.0
    %719 = vmatpush1.msra.mxu0 0.0
    %720 = vmatprep.subr.mxu0 0.0
    %721 = vmatpush1.msra.mxu0 0.0
    %722 = vmatprep.subr.mxu0 0.0
    %723 = vmatpush1.msra.mxu0 0.0
    %724 = vmatprep.subr.mxu0 0.0
    %725 = vmatpush1.msra.mxu0 0.0
    %726 = vmatprep.subr.mxu0 0.0
    %727 = vmatpush1.msra.mxu0 0.0
    %728 = vmatprep.subr.mxu0 0.0
    %729 = vmatpush1.msra.mxu0 0.0
    %730 = vmatprep.subr.mxu0 0.0
    %731 = vmatpush1.msra.mxu0 0.0
    %732 = vmatprep.subr.mxu0 0.0
    %733 = vmatpush1.msra.mxu0 0.0
    %734 = vmatprep.subr.mxu0 0.0
    %735 = vmatpush1.msra.mxu0 0.0
    %736 = vmatprep.subr.mxu0 0.0
    %737 = vmatpush1.msra.mxu0 0.0
    %738 = vmatprep.subr.mxu0 0.0
    %739 = vmatpush1.msra.mxu0 0.0
    %740 = vmatprep.mubr.f32.mxu0 0.0
    %741 = vmatmul.mubr.f32.gmra.mrb[0].mxu0 %v178
    %v742 = vpop.f32.mrb[0].mxu0
    %v743 = vadd.f32 %v674, %v742
    %v744 = vpop.f32.mrb[0].mxu0
    %745 = vdwg.mxu0
    %746 = vmatprep.subr.mxu0 0.0
    %747 = vmatpush1.msra.mxu0 %v669
    %748 = vmatprep.subr.mxu0 0.0
    %749 = vmatpush1.msra.mxu0 0.0
    %750 = vmatprep.subr.mxu0 0.0
    %751 = vmatpush1.msra.mxu0 0.0
    %752 = vmatprep.subr.mxu0 0.0
    %753 = vmatpush1.msra.mxu0 0.0
    %754 = vmatprep.subr.mxu0 0.0
    %755 = vmatpush1.msra.mxu0 0.0
    %756 = vmatprep.subr.mxu0 0.0
    %757 = vmatpush1.msra.mxu0 0.0
    %758 = vmatprep.subr.mxu0 0.0
    %759 = vmatpush1.msra.mxu0 0.0
    %760 = vmatprep.subr.mxu0 0.0
    %761 = vmatpush1.msra.mxu0 0.0
    %762 = vmatprep.subr.mxu0 0.0
    %763 = vmatpush1.msra.mxu0 0.0
    %764 = vmatprep.subr.mxu0 0.0
    %765 = vmatpush1.msra.mxu0 0.0
    %766 = vmatprep.subr.mxu0 0.0
    %767 = vmatpush1.msra.mxu0 0.0
    %768 = vmatprep.subr.mxu0 0.0
    %769 = vmatpush1.msra.mxu0 0.0
    %770 = vmatprep.subr.mxu0 0.0
    %771 = vmatpush1.msra.mxu0 0.0
    %772 = vmatprep.subr.mxu0 0.0
    %773 = vmatpush1.msra.mxu0 0.0
    %774 = vmatprep.subr.mxu0 0.0
    %775 = vmatpush1.msra.mxu0 0.0
    %776 = vmatprep.subr.mxu0 0.0
    %777 = vmatpush1.msra.mxu0 0.0
    %778 = vmatprep.subr.mxu0 0.0
    %779 = vmatpush1.msra.mxu0 0.0
    %780 = vmatprep.subr.mxu0 0.0
    %781 = vmatpush1.msra.mxu0 0.0
    %782 = vmatprep.subr.mxu0 0.0
    %783 = vmatpush1.msra.mxu0 0.0
    %784 = vmatprep.subr.mxu0 0.0
    %785 = vmatpush1.msra.mxu0 0.0
    %786 = vmatprep.subr.mxu0 0.0
    %787 = vmatpush1.msra.mxu0 0.0
    %788 = vmatprep.subr.mxu0 0.0
    %789 = vmatpush1.msra.mxu0 0.0
    %790 = vmatprep.subr.mxu0 0.0
    %791 = vmatpush1.msra.mxu0 0.0
    %792 = vmatprep.subr.mxu0 0.0
    %793 = vmatpush1.msra.mxu0 0.0
    %794 = vmatprep.subr.mxu0 0.0
    %795 = vmatpush1.msra.mxu0 0.0
    %796 = vmatprep.subr.mxu0 0.0
    %797 = vmatpush1.msra.mxu0 0.0
    %798 = vmatprep.subr.mxu0 0.0
    %799 = vmatpush1.msra.mxu0 0.0
    %800 = vmatprep.subr.mxu0 0.0
    %801 = vmatpush1.msra.mxu0 0.0
    %802 = vmatprep.subr.mxu0 0.0
    %803 = vmatpush1.msra.mxu0 0.0
    %804 = vmatprep.subr.mxu0 0.0
    %805 = vmatpush1.msra.mxu0 0.0
    %806 = vmatprep.subr.mxu0 0.0
    %807 = vmatpush1.msra.mxu0 0.0
    %808 = vmatprep.subr.mxu0 0.0
    %809 = vmatpush1.msra.mxu0 0.0
    %810 = vmatprep.mubr.f32.mxu0 0.0
    %811 = vmatmul.mubr.f32.gmra.mrb[0].mxu0 %v251
    %v812 = vpop.f32.mrb[0].mxu0
    %v813 = vadd.f32 %v674, %v812
    %v814 = vpop.f32.mrb[0].mxu0
    %815 = vdwg.mxu0
    %816 = vst.msk [vmem:[#allocation7] sm:$0xff] %vm87, %v743
    %817 = vst.msk [vmem:[#allocation7 + $0x8] sm:$0xff] %vm87, %v813
    // Predicated region
    $region42: #{tpu_custom_call.1} parent=1 // pred_check
      _
    $region43: #{tpu_custom_call.1} parent=1 // pred_check_branch
      %819 = sbr.rel (0) target = $region45
    $region44: #{tpu_custom_call.1} parent=1 // pred_region
      %s821 = ssub.s32 256, 256
      %822 = vsyncadd [#allocation4], %s821
      %s823 = sshll.u32 [#allocation7], 4
      %s824 = int_to_ptr.vmem [resolvable:$true] %s823
      %829 = dma.vmem_to_hbm [thread:$0]  %s824, 256, %s8, [#allocation4], 128, 128, 8
    $region45: #{tpu_custom_call.1} parent=1 // pred_fallthru
      _
    // Predicated region
    $region46: #{tpu_custom_call.1} parent=1 // pred_check
      _
    $region47: #{tpu_custom_call.1} parent=1 // pred_check_branch
      %831 = sbr.rel (0) target = $region49
    $region48: #{tpu_custom_call.1} parent=1 // pred_region
      %832 = dma.done [#allocation4], 256
    $region49: #{tpu_custom_call.1} parent=1 // pred_fallthru
      _
    %833 = vsyncpa [#allocation3], 1
    %834 = vsyncpa [#allocation6], 1
    %835 = vsyncpa [#allocation4], 1

</llo_original>
